<compile_context>
chip_gen: v5e
topology: v5e:2x2
jax: 0.10.0
libtpu: 0.0.40
codegen_flags: <defaults>
</compile_context>

<pallas_src>
import jax
import jax.numpy as jnp
from jax import lax
from jax.experimental import pallas as pl
from jax.experimental.pallas import tpu as pltpu

LANES = 128
F32 = jnp.float32
BF16 = jnp.bfloat16


# ----------------------------------------------------------------------------
# Pallas kernel: whole forward pass for one tile of flattened (batch*L) rows.
# ----------------------------------------------------------------------------
def _cnn_kernel(inp_ref, w_in_ref, w_main_ref, v_ref, out_ref):
    rows, narrow = inp_ref.shape

    inp = inp_ref[...]                      # (rows, narrow) bf16 compact slab
    v = v_ref[...]                          # (16, 128) f32 bias / tap slab

    # Boundary masks travel with the input (last two lanes): 1.0 where the row
    # has a valid previous / next row inside its own sequence.  Broadcast once.
    m_first = jnp.broadcast_to(
        inp[:, narrow - 2:narrow - 1].astype(F32), (rows, LANES))
    m_last = jnp.broadcast_to(
        inp[:, narrow - 1:narrow].astype(F32), (rows, LANES))

    def prev_rows(a):                       # a[l-1]; zero at sequence start
        return m_first * pltpu.roll(a, 1, axis=0)

    def next_rows(a):                       # a[l+1]; zero at sequence end
        return m_last * pltpu.roll(a, rows - 1, axis=0)

    def leaky(a):                           # LeakyReLU(0.01) == max(a, 0.01a)
        return jnp.maximum(a, 0.01 * a)

    def mm(a, w):                           # bf16 MXU matmul, f32 accumulate
        return jnp.dot(a.astype(BF16), w, preferred_element_type=F32)

    def conv_taps(p, bias_row):             # p: (rows, 384) = tap0|tap1|tap2
        return (prev_rows(p[:, 0:LANES])
                + p[:, LANES:2 * LANES]
                + next_rows(p[:, 2 * LANES:3 * LANES])
                + v[bias_row:bias_row + 1, :])

    # conv1 taps + one_day_ago lane placement in ONE narrow-K matmul.
    p1 = mm(inp, w_in_ref[...])                       # (rows, 512)
    h1 = leaky(conv_taps(p1[:, 0:3 * LANES], 0))      # lanes 0..63 live
    oda = p1[:, 3 * LANES:4 * LANES]                  # oda at lanes 3..5

    h2 = leaky(conv_taps(mm(h1, w_main_ref[0:LANES, :]), 1))           # 0..127
    h3 = leaky(conv_taps(mm(h2, w_main_ref[LANES:2 * LANES, :]), 2))   # 0..2

    # Grouped conv4 (in=6, out=3, groups=3): h3 / oda share one slab in
    # disjoint lanes, so only 2 rolls; the per-group lane-pair sum and the
    # conv4 bias are folded into Linear1 (see pack_params).
    s = h3 + oda
    y4 = prev_rows(s) * v[3:4, :] + s * v[4:5, :] + next_rows(s) * v[5:6, :]

    base = 2 * LANES                        # linear block rows of w_main
    g1 = leaky(mm(y4, w_main_ref[base:base + LANES, 0:LANES]) + v[6:7, :])
    g2 = leaky(mm(g1, w_main_ref[base:base + LANES, LANES:2 * LANES]) + v[7:8, :])
    g3 = mm(g2, w_main_ref[base:base + LANES, 2 * LANES:3 * LANES]) + v[8:9, :]

    out_ref[...] = g3                       # lane-dense (rows, 128) f32 store


# ----------------------------------------------------------------------------
# Wrapper
# ----------------------------------------------------------------------------
def _pick_batch_tile(B, L, target_rows=2048):
    """Largest per-step batch tile; prefer an even number of grid steps."""
    cands = [bt for bt in range(B - 1, 0, -1)
             if B % bt == 0 and (bt * L) % 16 == 0 and bt * L <= target_rows]
    for bt in cands:                        # even step count -> both v7x TCs busy
        if (B // bt) % 2 == 0:
            return bt
    if cands:
        return cands[0]
    return B                                # single-step fallback (full array)


def cnn_forward(x, one_day_ago, w_in, w_main, vslab):
    """x: (B, L, Cin) f32, one_day_ago: (B, L, 3) f32 -> (B, L, 3) f32."""
    B, L, Cin = x.shape
    assert one_day_ago.shape == (B, L, 3)
    narrow = w_in.shape[0]
    assert narrow >= Cin + 5
    rows = B * L

    bt = _pick_batch_tile(B, L)
    nb = B // bt
    if nb == 1:
        br = -(-rows // 16) * 16            # pad rows; block == full array
    else:
        br = bt * L
        # roll/mask invariant: every tile starts at a row that is a multiple of L
        assert br % 16 == 0 and br % L == 0
    rows_pad = nb * br

    # Compact bf16 input slab: x | one_day_ago | (m_first, m_last).
    pos = jnp.arange(rows_pad, dtype=jnp.int32) % L
    inp = jnp.zeros((rows_pad, narrow), F32)
    inp = inp.at[:rows, :Cin].set(x.reshape(rows, Cin))
    inp = inp.at[:rows, Cin:Cin + 3].set(one_day_ago.reshape(rows, 3))
    inp = inp.at[:, narrow - 2].set((pos != 0).astype(F32))
    inp = inp.at[:, narrow - 1].set((pos != L - 1).astype(F32))
    inp = inp.astype(BF16)

    grid_spec = pltpu.PrefetchScalarGridSpec(
        num_scalar_prefetch=0,
        grid=(nb,),
        in_specs=[
            pl.BlockSpec((br, narrow), lambda i: (i, 0)),
            pl.BlockSpec(w_in.shape, lambda i: (0, 0)),
            pl.BlockSpec(w_main.shape, lambda i: (0, 0)),
            pl.BlockSpec(vslab.shape, lambda i: (0, 0)),
        ],
        out_specs=pl.BlockSpec((br, LANES), lambda i: (i, 0)),
    )

    out = pl.pallas_call(
        _cnn_kernel,
        out_shape=jax.ShapeDtypeStruct((rows_pad, LANES), F32),
        grid_spec=grid_spec,
        compiler_params=pltpu.CompilerParams(
            dimension_semantics=("parallel",)),
    )(inp, w_in, w_main, vslab)

    return out[:rows, :3].reshape(B, L, 3)


# ----------------------------------------------------------------------------
# Parameter construction + packing into the kernel slabs
# ----------------------------------------------------------------------------
def pack_params(torch_params, in_features):
    (W1, B1, W2, B2, W3, B3, W4, B4, L1, Lb1, L2, Lb2, L3, Lb3) = torch_params
    Cin = in_features
    narrow = 8 * (-(-(Cin + 5) // 8))       # x | oda(3) | masks(2), 8-aligned

    # w_in: conv1 taps (lane blocks 0..2) + oda->lanes 3..5 selector (block 3).
    w_in = jnp.zeros((narrow, 4 * LANES), F32)
    for k in range(3):
        w_in = w_in.at[:Cin, k * LANES:k * LANES + 64].set(W1[:, :, k].T)
    for c in range(3):
        w_in = w_in.at[Cin + c, 3 * LANES + 3 + c].set(1.0)
    w_in = w_in.astype(BF16)

    # w_main rows: [0..127] conv2 taps, [128..255] conv3 taps,
    #              [256..383] linear block = L1dup | L2 | L3 (lane blocks 0/1/2).
    w_main = jnp.zeros((3 * LANES, 3 * LANES), F32)
    for k in range(3):
        w_main = w_main.at[0:64, k * LANES:k * LANES + 128].set(W2[:, :, k].T)
        w_main = w_main.at[LANES:2 * LANES, k * LANES:k * LANES + 3].set(W3[:, :, k].T)
    base = 2 * LANES
    w_main = w_main.at[base:base + 3, 0:32].set(L1.T)       # applied to h3 lanes
    w_main = w_main.at[base + 3:base + 6, 0:32].set(L1.T)   # applied to oda lanes
    w_main = w_main.at[base:base + 32, LANES:LANES + 64].set(L2.T)
    w_main = w_main.at[base:base + 64, 2 * LANES:2 * LANES + 3].set(L3.T)
    w_main = w_main.astype(BF16)

    # v slab rows: b1, b2, b3, tap0, tap1, tap2, lb1_eff, lb2, lb3 (+ padding).
    def row(vec):
        r = jnp.zeros((LANES,), F32)
        return r.at[:vec.shape[0]].set(vec)

    taps = []
    for k in range(3):
        t = jnp.zeros((LANES,), F32)
        t = t.at[0:3].set(W4[:, 0, k])      # multiplies h3 channels (lanes 0..2)
        t = t.at[3:6].set(W4[:, 1, k])      # multiplies oda channels (lanes 3..5)
        taps.append(t)
    lb1_eff = Lb1 + B4 @ L1.T               # conv4 bias folded into Linear1 bias

    vrows = [row(B1), row(B2), row(B3), taps[0], taps[1], taps[2],
             row(lb1_eff), row(Lb2), row(Lb3)]
    vrows += [jnp.zeros((LANES,), F32)] * (16 - len(vrows))
    vslab = jnp.stack(vrows)                # (16, 128) f32
    return w_in, w_main, vslab


def make_params(key, in_features, out_features=3):
    ks = jax.random.split(key, 14)
    n = lambda k, s: jax.random.normal(k, s, F32) * 0.1

    W1 = n(ks[0], (64, in_features, 3));   B1 = n(ks[1], (64,))
    W2 = n(ks[2], (128, 64, 3));           B2 = n(ks[3], (128,))
    W3 = n(ks[4], (out_features, 128, 3)); B3 = n(ks[5], (out_features,))
    W4 = n(ks[6], (3, 2, 3));              B4 = n(ks[7], (3,))     # groups=3
    L1 = n(ks[8], (32, 3));                Lb1 = n(ks[9], (32,))
    L2 = n(ks[10], (64, 32));              Lb2 = n(ks[11], (64,))
    L3 = n(ks[12], (3, 64));               Lb3 = n(ks[13], (3,))

    torch_params = (W1, B1, W2, B2, W3, B3, W4, B4, L1, Lb1, L2, Lb2, L3, Lb3)
    return torch_params, pack_params(torch_params, in_features)


# ----------------------------------------------------------------------------
# Pure-JAX reference (mirrors the PyTorch forward exactly), for validation.
# ----------------------------------------------------------------------------
def ref_forward(x, one_day_ago, torch_params):
    (W1, B1, W2, B2, W3, B3, W4, B4, L1, Lb1, L2, Lb2, L3, Lb3) = torch_params
    lrelu = lambda v: jnp.where(v >= 0, v, 0.01 * v)

    def conv1d(h, W, b, groups=1):
        y = lax.conv_general_dilated(h, W, window_strides=(1,), padding=((1, 1),),
                                     dimension_numbers=("NCH", "OIH", "NCH"),
                                     feature_group_count=groups)
        return y + b[None, :, None]

    xt = jnp.transpose(x, (0, 2, 1))             # (B, C, L)
    odt = jnp.transpose(one_day_ago, (0, 2, 1))  # (B, 3, L)
    h = lrelu(conv1d(xt, W1, B1))
    h = lrelu(conv1d(h, W2, B2))
    h = lrelu(conv1d(h, W3, B3))                 # (B, 3, L)
    feats = jnp.concatenate([h[:, 0:1], odt[:, 0:1],
                             h[:, 1:2], odt[:, 1:2],
                             h[:, 2:3], odt[:, 2:3]], axis=1)   # (B, 6, L)
    h = conv1d(feats, W4, B4, groups=3)          # (B, 3, L)
    z = jnp.transpose(h, (0, 2, 1))              # (B, L, 3)
    z = lrelu(z @ L1.T + Lb1)
    z = lrelu(z @ L2.T + Lb2)
    z = z @ L3.T + Lb3
    return z


if __name__ == "__main__":
    IN_FEATURES = 4
    key = jax.random.PRNGKey(0)
    kp, kx1, kd1, kx2, kd2 = jax.random.split(key, 5)
    torch_params, (w_in, w_main, vslab) = make_params(kp, IN_FEATURES)

    # Case 1: small, single-step grid path.  Case 2: exercises the 2-step grid.
    cases = [(2, 8, kx1, kd1), (4, 8, kx2, kd2)]
    for (B, L, kx, kd) in cases:
        x = jax.random.normal(kx, (B, L, IN_FEATURES), F32)
        one_day_ago = jax.random.normal(kd, (B, L, 3), F32)

        out = cnn_forward(x, one_day_ago, w_in, w_main, vslab)
        out = jax.block_until_ready(out)

        ref = ref_forward(x, one_day_ago, torch_params)
        assert out.shape == (B, L, 3)
        max_err = float(jnp.max(jnp.abs(out - ref)))
        assert jnp.allclose(out, ref, atol=3e-2, rtol=3e-2), (
            f"mismatch vs reference at B={B}, L={L} (max abs err {max_err})")

    print("KERNEL_OK")
</pallas_src>

<mosaic_0001>
module attributes {stable_mosaic.version = 11 : i64} {
  func.func @_cnn_kernel(%arg0: i32, %arg1: memref<16x16xbf16, #tpu.memory_space<vmem>>, %arg2: memref<16x512xbf16, #tpu.memory_space<vmem>>, %arg3: memref<384x384xbf16, #tpu.memory_space<vmem>>, %arg4: memref<16x128xf32, #tpu.memory_space<vmem>>, %arg5: memref<16x128xf32, #tpu.memory_space<vmem>>) attributes {dimension_semantics = [#tpu.dimension_semantics<parallel>], iteration_bounds = array<i64: 1>, scalar_prefetch = 0 : i64, scratch_operands = 0 : i64, tpu.core_type = #tpu.core_type<tc>, window_params = [{transform_indices = @transform_0, window_bounds = array<i64: 16, 16>}, {pipeline_mode = #tpu.pipeline_mode<synchronous>, transform_indices = @transform_1, window_bounds = array<i64: 16, 512>}, {pipeline_mode = #tpu.pipeline_mode<synchronous>, transform_indices = @transform_2, window_bounds = array<i64: 384, 384>}, {pipeline_mode = #tpu.pipeline_mode<synchronous>, transform_indices = @transform_3, window_bounds = array<i64: 16, 128>}, {transform_indices = @transform_4, window_bounds = array<i64: 16, 128>}]} {
    %c0 = arith.constant 0 : index
    %c0_0 = arith.constant 0 : index
    %0 = vector.load %arg1[%c0, %c0_0] : memref<16x16xbf16, #tpu.memory_space<vmem>>, vector<16x16xbf16>
    %c0_1 = arith.constant 0 : index
    %c0_2 = arith.constant 0 : index
    %1 = vector.load %arg4[%c0_1, %c0_2] : memref<16x128xf32, #tpu.memory_space<vmem>>, vector<16x128xf32>
    %2 = vector.extract_strided_slice %0 {offsets = [0, 14], sizes = [16, 1], strides = [1, 1]} : vector<16x16xbf16> to vector<16x1xbf16>
    %3 = arith.extf %2 : vector<16x1xbf16> to vector<16x1xf32>
    %4 = vector.shape_cast %3 : vector<16x1xf32> to vector<16x1xf32>
    %5 = vector.broadcast %4 : vector<16x1xf32> to vector<16x128xf32>
    %6 = vector.extract_strided_slice %0 {offsets = [0, 15], sizes = [16, 1], strides = [1, 1]} : vector<16x16xbf16> to vector<16x1xbf16>
    %7 = arith.extf %6 : vector<16x1xbf16> to vector<16x1xf32>
    %8 = vector.shape_cast %7 : vector<16x1xf32> to vector<16x1xf32>
    %9 = vector.broadcast %8 : vector<16x1xf32> to vector<16x128xf32>
    %c0_3 = arith.constant 0 : index
    %c0_4 = arith.constant 0 : index
    %10 = vector.load %arg2[%c0_3, %c0_4] : memref<16x512xbf16, #tpu.memory_space<vmem>>, vector<16x512xbf16>
    %cst = arith.constant dense<0.000000e+00> : vector<16x512xf32>
    %11 = tpu.matmul %0, %10, %cst {dimension_numbers = #tpu.dot_dimension_numbers<[1], [0], [0], [1], [0, 0, 1, 1], [], []>} : vector<16x16xbf16>, vector<16x512xbf16>, vector<16x512xf32> -> vector<16x512xf32>
    %12 = vector.extract_strided_slice %11 {offsets = [0, 0], sizes = [16, 384], strides = [1, 1]} : vector<16x512xf32> to vector<16x384xf32>
    %13 = vector.extract_strided_slice %12 {offsets = [0, 0], sizes = [16, 128], strides = [1, 1]} : vector<16x384xf32> to vector<16x128xf32>
    %c1_i32 = arith.constant 1 : i32
    %14 = tpu.dynamic_rotate %13 by %c1_i32 dim 0 : vector<16x128xf32>, i32 -> vector<16x128xf32>
    %15 = arith.mulf %5, %14 : vector<16x128xf32>
    %16 = vector.extract_strided_slice %12 {offsets = [0, 128], sizes = [16, 128], strides = [1, 1]} : vector<16x384xf32> to vector<16x128xf32>
    %17 = arith.addf %15, %16 : vector<16x128xf32>
    %18 = vector.extract_strided_slice %12 {offsets = [0, 256], sizes = [16, 128], strides = [1, 1]} : vector<16x384xf32> to vector<16x128xf32>
    %c15_i32 = arith.constant 15 : i32
    %19 = tpu.dynamic_rotate %18 by %c15_i32 dim 0 : vector<16x128xf32>, i32 -> vector<16x128xf32>
    %20 = arith.mulf %9, %19 : vector<16x128xf32>
    %21 = arith.addf %17, %20 : vector<16x128xf32>
    %22 = vector.extract_strided_slice %1 {offsets = [0, 0], sizes = [1, 128], strides = [1, 1]} : vector<16x128xf32> to vector<1x128xf32>
    %23 = vector.broadcast %22 : vector<1x128xf32> to vector<16x128xf32>
    %24 = arith.addf %21, %23 : vector<16x128xf32>
    %cst_5 = arith.constant 0.00999999977 : f32
    %25 = vector.broadcast %cst_5 : f32 to vector<16x128xf32>
    %26 = arith.mulf %25, %24 : vector<16x128xf32>
    %27 = arith.maximumf %24, %26 : vector<16x128xf32>
    %28 = vector.extract_strided_slice %11 {offsets = [0, 384], sizes = [16, 128], strides = [1, 1]} : vector<16x512xf32> to vector<16x128xf32>
    %c0_6 = arith.constant 0 : index
    %c0_7 = arith.constant 0 : index
    %29 = vector.load %arg3[%c0_6, %c0_7] : memref<384x384xbf16, #tpu.memory_space<vmem>>, vector<128x384xbf16>
    %30 = arith.truncf %27 : vector<16x128xf32> to vector<16x128xbf16>
    %cst_8 = arith.constant dense<0.000000e+00> : vector<16x384xf32>
    %31 = tpu.matmul %30, %29, %cst_8 {dimension_numbers = #tpu.dot_dimension_numbers<[1], [0], [0], [1], [0, 0, 1, 1], [], []>} : vector<16x128xbf16>, vector<128x384xbf16>, vector<16x384xf32> -> vector<16x384xf32>
    %32 = vector.extract_strided_slice %31 {offsets = [0, 0], sizes = [16, 128], strides = [1, 1]} : vector<16x384xf32> to vector<16x128xf32>
    %c1_i32_9 = arith.constant 1 : i32
    %33 = tpu.dynamic_rotate %32 by %c1_i32_9 dim 0 : vector<16x128xf32>, i32 -> vector<16x128xf32>
    %34 = arith.mulf %5, %33 : vector<16x128xf32>
    %35 = vector.extract_strided_slice %31 {offsets = [0, 128], sizes = [16, 128], strides = [1, 1]} : vector<16x384xf32> to vector<16x128xf32>
    %36 = arith.addf %34, %35 : vector<16x128xf32>
    %37 = vector.extract_strided_slice %31 {offsets = [0, 256], sizes = [16, 128], strides = [1, 1]} : vector<16x384xf32> to vector<16x128xf32>
    %c15_i32_10 = arith.constant 15 : i32
    %38 = tpu.dynamic_rotate %37 by %c15_i32_10 dim 0 : vector<16x128xf32>, i32 -> vector<16x128xf32>
    %39 = arith.mulf %9, %38 : vector<16x128xf32>
    %40 = arith.addf %36, %39 : vector<16x128xf32>
    %41 = vector.extract_strided_slice %1 {offsets = [1, 0], sizes = [1, 128], strides = [1, 1]} : vector<16x128xf32> to vector<1x128xf32>
    %42 = vector.broadcast %41 : vector<1x128xf32> to vector<16x128xf32>
    %43 = arith.addf %40, %42 : vector<16x128xf32>
    %cst_11 = arith.constant 0.00999999977 : f32
    %44 = vector.broadcast %cst_11 : f32 to vector<16x128xf32>
    %45 = arith.mulf %44, %43 : vector<16x128xf32>
    %46 = arith.maximumf %43, %45 : vector<16x128xf32>
    %c128 = arith.constant 128 : index
    %c0_12 = arith.constant 0 : index
    %47 = vector.load %arg3[%c128, %c0_12] : memref<384x384xbf16, #tpu.memory_space<vmem>>, vector<128x384xbf16>
    %48 = arith.truncf %46 : vector<16x128xf32> to vector<16x128xbf16>
    %cst_13 = arith.constant dense<0.000000e+00> : vector<16x384xf32>
    %49 = tpu.matmul %48, %47, %cst_13 {dimension_numbers = #tpu.dot_dimension_numbers<[1], [0], [0], [1], [0, 0, 1, 1], [], []>} : vector<16x128xbf16>, vector<128x384xbf16>, vector<16x384xf32> -> vector<16x384xf32>
    %50 = vector.extract_strided_slice %49 {offsets = [0, 0], sizes = [16, 128], strides = [1, 1]} : vector<16x384xf32> to vector<16x128xf32>
    %c1_i32_14 = arith.constant 1 : i32
    %51 = tpu.dynamic_rotate %50 by %c1_i32_14 dim 0 : vector<16x128xf32>, i32 -> vector<16x128xf32>
    %52 = arith.mulf %5, %51 : vector<16x128xf32>
    %53 = vector.extract_strided_slice %49 {offsets = [0, 128], sizes = [16, 128], strides = [1, 1]} : vector<16x384xf32> to vector<16x128xf32>
    %54 = arith.addf %52, %53 : vector<16x128xf32>
    %55 = vector.extract_strided_slice %49 {offsets = [0, 256], sizes = [16, 128], strides = [1, 1]} : vector<16x384xf32> to vector<16x128xf32>
    %c15_i32_15 = arith.constant 15 : i32
    %56 = tpu.dynamic_rotate %55 by %c15_i32_15 dim 0 : vector<16x128xf32>, i32 -> vector<16x128xf32>
    %57 = arith.mulf %9, %56 : vector<16x128xf32>
    %58 = arith.addf %54, %57 : vector<16x128xf32>
    %59 = vector.extract_strided_slice %1 {offsets = [2, 0], sizes = [1, 128], strides = [1, 1]} : vector<16x128xf32> to vector<1x128xf32>
    %60 = vector.broadcast %59 : vector<1x128xf32> to vector<16x128xf32>
    %61 = arith.addf %58, %60 : vector<16x128xf32>
    %cst_16 = arith.constant 0.00999999977 : f32
    %62 = vector.broadcast %cst_16 : f32 to vector<16x128xf32>
    %63 = arith.mulf %62, %61 : vector<16x128xf32>
    %64 = arith.maximumf %61, %63 : vector<16x128xf32>
    %65 = arith.addf %64, %28 : vector<16x128xf32>
    %c1_i32_17 = arith.constant 1 : i32
    %66 = tpu.dynamic_rotate %65 by %c1_i32_17 dim 0 : vector<16x128xf32>, i32 -> vector<16x128xf32>
    %67 = arith.mulf %5, %66 : vector<16x128xf32>
    %68 = vector.extract_strided_slice %1 {offsets = [3, 0], sizes = [1, 128], strides = [1, 1]} : vector<16x128xf32> to vector<1x128xf32>
    %69 = vector.broadcast %68 : vector<1x128xf32> to vector<16x128xf32>
    %70 = arith.mulf %67, %69 : vector<16x128xf32>
    %71 = vector.extract_strided_slice %1 {offsets = [4, 0], sizes = [1, 128], strides = [1, 1]} : vector<16x128xf32> to vector<1x128xf32>
    %72 = vector.broadcast %71 : vector<1x128xf32> to vector<16x128xf32>
    %73 = arith.mulf %65, %72 : vector<16x128xf32>
    %74 = arith.addf %70, %73 : vector<16x128xf32>
    %c15_i32_18 = arith.constant 15 : i32
    %75 = tpu.dynamic_rotate %65 by %c15_i32_18 dim 0 : vector<16x128xf32>, i32 -> vector<16x128xf32>
    %76 = arith.mulf %9, %75 : vector<16x128xf32>
    %77 = vector.extract_strided_slice %1 {offsets = [5, 0], sizes = [1, 128], strides = [1, 1]} : vector<16x128xf32> to vector<1x128xf32>
    %78 = vector.broadcast %77 : vector<1x128xf32> to vector<16x128xf32>
    %79 = arith.mulf %76, %78 : vector<16x128xf32>
    %80 = arith.addf %74, %79 : vector<16x128xf32>
    %c256 = arith.constant 256 : index
    %c0_19 = arith.constant 0 : index
    %81 = vector.load %arg3[%c256, %c0_19] : memref<384x384xbf16, #tpu.memory_space<vmem>>, vector<128x128xbf16>
    %82 = arith.truncf %80 : vector<16x128xf32> to vector<16x128xbf16>
    %cst_20 = arith.constant dense<0.000000e+00> : vector<16x128xf32>
    %83 = tpu.matmul %82, %81, %cst_20 {dimension_numbers = #tpu.dot_dimension_numbers<[1], [0], [0], [1], [0, 0, 1, 1], [], []>} : vector<16x128xbf16>, vector<128x128xbf16>, vector<16x128xf32> -> vector<16x128xf32>
    %84 = vector.extract_strided_slice %1 {offsets = [6, 0], sizes = [1, 128], strides = [1, 1]} : vector<16x128xf32> to vector<1x128xf32>
    %85 = vector.broadcast %84 : vector<1x128xf32> to vector<16x128xf32>
    %86 = arith.addf %83, %85 : vector<16x128xf32>
    %cst_21 = arith.constant 0.00999999977 : f32
    %87 = vector.broadcast %cst_21 : f32 to vector<16x128xf32>
    %88 = arith.mulf %87, %86 : vector<16x128xf32>
    %89 = arith.maximumf %86, %88 : vector<16x128xf32>
    %c256_22 = arith.constant 256 : index
    %c128_23 = arith.constant 128 : index
    %90 = vector.load %arg3[%c256_22, %c128_23] : memref<384x384xbf16, #tpu.memory_space<vmem>>, vector<128x128xbf16>
    %91 = arith.truncf %89 : vector<16x128xf32> to vector<16x128xbf16>
    %cst_24 = arith.constant dense<0.000000e+00> : vector<16x128xf32>
    %92 = tpu.matmul %91, %90, %cst_24 {dimension_numbers = #tpu.dot_dimension_numbers<[1], [0], [0], [1], [0, 0, 1, 1], [], []>} : vector<16x128xbf16>, vector<128x128xbf16>, vector<16x128xf32> -> vector<16x128xf32>
    %93 = vector.extract_strided_slice %1 {offsets = [7, 0], sizes = [1, 128], strides = [1, 1]} : vector<16x128xf32> to vector<1x128xf32>
    %94 = vector.broadcast %93 : vector<1x128xf32> to vector<16x128xf32>
    %95 = arith.addf %92, %94 : vector<16x128xf32>
    %cst_25 = arith.constant 0.00999999977 : f32
    %96 = vector.broadcast %cst_25 : f32 to vector<16x128xf32>
    %97 = arith.mulf %96, %95 : vector<16x128xf32>
    %98 = arith.maximumf %95, %97 : vector<16x128xf32>
    %c256_26 = arith.constant 256 : index
    %c256_27 = arith.constant 256 : index
    %99 = vector.load %arg3[%c256_26, %c256_27] : memref<384x384xbf16, #tpu.memory_space<vmem>>, vector<128x128xbf16>
    %100 = arith.truncf %98 : vector<16x128xf32> to vector<16x128xbf16>
    %cst_28 = arith.constant dense<0.000000e+00> : vector<16x128xf32>
    %101 = tpu.matmul %100, %99, %cst_28 {dimension_numbers = #tpu.dot_dimension_numbers<[1], [0], [0], [1], [0, 0, 1, 1], [], []>} : vector<16x128xbf16>, vector<128x128xbf16>, vector<16x128xf32> -> vector<16x128xf32>
    %102 = vector.extract_strided_slice %1 {offsets = [8, 0], sizes = [1, 128], strides = [1, 1]} : vector<16x128xf32> to vector<1x128xf32>
    %103 = vector.broadcast %102 : vector<1x128xf32> to vector<16x128xf32>
    %104 = arith.addf %101, %103 : vector<16x128xf32>
    %c0_29 = arith.constant 0 : index
    %c0_30 = arith.constant 0 : index
    %105 = vector.load %arg5[%c0_29, %c0_30] : memref<16x128xf32, #tpu.memory_space<vmem>>, vector<16x128xf32>
    tpu.vector_store %arg5[%c0_29, %c0_30], %104 {strides = array<i32>} : memref<16x128xf32, #tpu.memory_space<vmem>>, vector<16x128xf32>,
    return
  }
  func.func @transform_0(%arg0: i32) -> (i32, i32) {
    %c0_i32 = arith.constant 0 : i32
    %c0_i32_0 = arith.constant 0 : i32
    return %arg0, %c0_i32 : i32, i32
  }
  func.func @transform_1(%arg0: i32) -> (i32, i32) {
    %c0_i32 = arith.constant 0 : i32
    %c0_i32_0 = arith.constant 0 : i32
    %c0_i32_1 = arith.constant 0 : i32
    return %c0_i32, %c0_i32_0 : i32, i32
  }
  func.func @transform_2(%arg0: i32) -> (i32, i32) {
    %c0_i32 = arith.constant 0 : i32
    %c0_i32_0 = arith.constant 0 : i32
    %c0_i32_1 = arith.constant 0 : i32
    return %c0_i32, %c0_i32_0 : i32, i32
  }
  func.func @transform_3(%arg0: i32) -> (i32, i32) {
    %c0_i32 = arith.constant 0 : i32
    %c0_i32_0 = arith.constant 0 : i32
    %c0_i32_1 = arith.constant 0 : i32
    return %c0_i32, %c0_i32_0 : i32, i32
  }
  func.func @transform_4(%arg0: i32) -> (i32, i32) {
    %c0_i32 = arith.constant 0 : i32
    %c0_i32_0 = arith.constant 0 : i32
    return %arg0, %c0_i32 : i32, i32
  }
}

</mosaic_0001>

<llo_original>
// kernel: tpu_custom_call.1
$region0: #{tpu_custom_call.1}
  #allocation0 [shape = 'u32[]', space=smem, size = 0x4, offset = 0x4, fixed_abs, tag = 'smem constant byte address 0x4 - core index']
  #allocation1 [shape = 'u32[72,128]{1,0:T(1,128)}', space=vmem, size = 0x9000, scoped, tag = 'internal scratch']
  %s0 = inlined_call_operand.hbm [shape: bf16[16,16], index: 0, kind: input, shape index: {}]
  %s1 = inlined_call_operand.hbm [shape: bf16[16,512], index: 1, kind: input, shape index: {}]
  %s2 = inlined_call_operand.hbm [shape: bf16[384,384], index: 2, kind: input, shape index: {}]
  %s3 = inlined_call_operand.hbm [shape: f32[16,128], index: 3, kind: input, shape index: {}]
  %s4 = inlined_call_operand.hbm [shape: f32[16,128], index: 4, kind: output, shape index: {}]
  %s5 = sld [smem:[#allocation0]]
  $region42: #{tpu_custom_call.1} parent=0
    _
  %s7 = ssub.s32 1, %s5
  %s8 = scalar_select 0, %s7, %s5
  $region1: #{tpu_custom_call.1} parent=0
    #allocation2 [shape = 'u8[4096]{0}', space=vmem, size = 0x1000, scoped, tag = 'input window, operand 0, single buffered']
    #allocation3 [shape = 's32[1]{0}', space=sflag, size = 0x4, scoped, tag = 'scoped memory for tpu_custom_call.1']
    #allocation4 [shape = 's32[1]{0}', space=sflag, size = 0x4, scoped, tag = 'scoped memory for tpu_custom_call.1']
    #allocation5 [shape = 'u8[16384]{0}', space=vmem, size = 0x4000, scoped, tag = 'input window, operand 1, single buffered']
    #allocation6 [shape = 's32[1]{0}', space=sflag, size = 0x4, scoped, tag = 'scoped memory for tpu_custom_call.1']
    #allocation7 [shape = 'u8[294912]{0}', space=vmem, size = 0x48000, scoped, tag = 'input window, operand 2, single buffered']
    #allocation8 [shape = 'u8[8192]{0}', space=vmem, size = 0x2000, scoped, tag = 'input window, operand 3, single buffered']
    #allocation9 [shape = 's32[1]{0}', space=sflag, size = 0x4, scoped, tag = 'scoped memory for tpu_custom_call.1']
    #allocation10 [shape = 'u8[8192]{0}', space=vmem, size = 0x2000, scoped, tag = 'output window, operand 0, single buffered']
    %9 = vsyncpa [#allocation3], 0
    %10 = vsyncpa [#allocation6], 0
    %11 = vsyncpa [#allocation9], 0
    %12 = vsyncpa [#allocation4], 0
    // Predicated region
    $region2: #{tpu_custom_call.1} parent=1 // pred_check
      _
    $region3: #{tpu_custom_call.1} parent=1 // pred_check_branch
      %14 = sbr.rel (0) target = $region5
    $region4: #{tpu_custom_call.1} parent=1 // pred_region
      %16 = vsyncadd [#allocation3], 0
      %s17 = sshll.u32 %s0, 4
      %s18 = int_to_ptr.hbm [resolvable:$true] %s17
      %s19 = sshll.u32 [#allocation2], 4
      %s20 = int_to_ptr.vmem [resolvable:$true] %s19
      %25 = dma.hbm_to_vmem [thread:$0]  %s18, 128, %s20, [#allocation3], 64, 64, 4
    $region5: #{tpu_custom_call.1} parent=1 // pred_fallthru
      _
    // Predicated region
    $region6: #{tpu_custom_call.1} parent=1 // pred_check
      _
    $region7: #{tpu_custom_call.1} parent=1 // pred_check_branch
      %27 = sbr.rel (0) target = $region9
    $region8: #{tpu_custom_call.1} parent=1 // pred_region
      %29 = vsyncadd [#allocation6], 0
      %s30 = sshll.u32 %s1, 4
      %s31 = int_to_ptr.hbm [resolvable:$true] %s30
      %s32 = sshll.u32 [#allocation5], 4
      %s33 = int_to_ptr.vmem [resolvable:$true] %s32
      %38 = dma.hbm_to_vmem [thread:$0]  %s31, 512, %s33, [#allocation6], 256, 256, 16
    $region9: #{tpu_custom_call.1} parent=1 // pred_fallthru
      _
    // Predicated region
    $region10: #{tpu_custom_call.1} parent=1 // pred_check
      _
    $region11: #{tpu_custom_call.1} parent=1 // pred_check_branch
      %40 = sbr.rel (0) target = $region13
    $region12: #{tpu_custom_call.1} parent=1 // pred_region
      %42 = vsyncadd [#allocation6], 0
      %s43 = sshll.u32 %s2, 4
      %s44 = int_to_ptr.hbm [resolvable:$true] %s43
      %s45 = sshll.u32 [#allocation7], 4
      %s46 = int_to_ptr.vmem [resolvable:$true] %s45
      %51 = dma.hbm_to_vmem [thread:$0]  %s44, 9216, %s46, [#allocation6], 192, 192, 12
    $region13: #{tpu_custom_call.1} parent=1 // pred_fallthru
      _
    // Predicated region
    $region14: #{tpu_custom_call.1} parent=1 // pred_check
      _
    $region15: #{tpu_custom_call.1} parent=1 // pred_check_branch
      %53 = sbr.rel (0) target = $region17
    $region16: #{tpu_custom_call.1} parent=1 // pred_region
      %55 = vsyncadd [#allocation9], 0
      %s56 = sshll.u32 %s3, 4
      %s57 = int_to_ptr.hbm [resolvable:$true] %s56
      %s58 = sshll.u32 [#allocation8], 4
      %s59 = int_to_ptr.vmem [resolvable:$true] %s58
      %64 = dma.hbm_to_vmem [thread:$0]  %s57, 256, %s59, [#allocation9], 128, 128, 8
    $region17: #{tpu_custom_call.1} parent=1 // pred_fallthru
      _
    // Predicated region
    $region18: #{tpu_custom_call.1} parent=1 // pred_check
      _
    $region19: #{tpu_custom_call.1} parent=1 // pred_check_branch
      %66 = sbr.rel (0) target = $region21
    $region20: #{tpu_custom_call.1} parent=1 // pred_region
      %68 = dma.done [#allocation3], 128
    $region21: #{tpu_custom_call.1} parent=1 // pred_fallthru
      _
    // Predicated region
    $region22: #{tpu_custom_call.1} parent=1 // pred_check
      _
    $region23: #{tpu_custom_call.1} parent=1 // pred_check_branch
      %70 = sbr.rel (0) target = $region25
    $region24: #{tpu_custom_call.1} parent=1 // pred_region
      %72 = dma.done [#allocation6], 512
    $region25: #{tpu_custom_call.1} parent=1 // pred_fallthru
      _
    // Predicated region
    $region26: #{tpu_custom_call.1} parent=1 // pred_check
      _
    $region27: #{tpu_custom_call.1} parent=1 // pred_check_branch
      %74 = sbr.rel (0) target = $region29
    $region28: #{tpu_custom_call.1} parent=1 // pred_region
      %76 = dma.done [#allocation6], 9216
    $region29: #{tpu_custom_call.1} parent=1 // pred_fallthru
      _
    // Predicated region
    $region30: #{tpu_custom_call.1} parent=1 // pred_check
      _
    $region31: #{tpu_custom_call.1} parent=1 // pred_check_branch
      %78 = sbr.rel (0) target = $region33
    $region32: #{tpu_custom_call.1} parent=1 // pred_region
      %80 = dma.done [#allocation9], 256
    $region33: #{tpu_custom_call.1} parent=1 // pred_fallthru
      _
    %v82 = vld [vmem:[#allocation2] sm:$0xf]
    %v83 = vld [vmem:[#allocation2 + $0x4] sm:$0xf]
    %v84 = vld [vmem:[#allocation8] sm:$0xff]
    %v85 = vld [vmem:[#allocation8 + $0x8] sm:$0xff]
    %v86 = vunpack.c.l.bf16 %v82
    %v87 = vunpack.c.l.bf16 %v83
    %89 = vset.pattern.permute.xlu0 14
    %90 = vperm.xlu0 %89, %v86
    %v91 = vpop.permute.xlu0 %90
    %94 = vset.pattern.permute.xlu0 14
    %95 = vperm.xlu0 %94, %v87
    %v96 = vpop.permute.xlu0 %95
    %98 = vset.pattern.permute.xlu0 15
    %99 = vperm.xlu0 %98, %v86
    %v100 = vpop.permute.xlu0 %99
    %102 = vset.pattern.permute.xlu0 15
    %103 = vperm.xlu0 %102, %v87
    %v104 = vpop.permute.xlu0 %103
    %v106 = vld [vmem:[#allocation5] sm:$0xff]
    %v107 = vld [vmem:[#allocation5 + $0x8] sm:$0xff]
    %v108 = vld [vmem:[#allocation5 + $0x10] sm:$0xff]
    %v109 = vld [vmem:[#allocation5 + $0x18] sm:$0xff]
    %v112 = vunpack.c.l.b16 %v82
    %v113 = vunpack.c.l.b16 %v83
    %v114 = vpack.c.b16 %v113, %v112
    %v119 = vunpack.c.l.b16 %v106
    %v120 = vunpack.c.h.b16 %v106
    %v121 = vunpack.c.l.b16 %v107
    %v122 = vunpack.c.h.b16 %v107
    %v123 = vunpack.c.l.b16 %v108
    %v124 = vunpack.c.h.b16 %v108
    %v125 = vunpack.c.l.b16 %v109
    %v126 = vunpack.c.h.b16 %v109
    %v127 = vpack.c.b16 %v123, %v119
    %v128 = vpack.c.b16 %v124, %v120
    %v129 = vpack.c.b16 %v125, %v121
    %v130 = vpack.c.b16 %v126, %v122
    %vm135 = vcmask 130048
    %v137 = vsel %vm135, %v114, 0
    %139 = vmatpush.bf16.msra.mxu0 0
    %140 = vmatpush.bf16.msra.mxu0 0
    %141 = vmatpush.bf16.msra.mxu0 0
    %142 = vmatpush.bf16.msra.mxu0 0
    %143 = vmatpush.bf16.msra.mxu0 0
    %144 = vmatpush.bf16.msra.mxu0 0
    %145 = vmatpush.bf16.msra.mxu0 0
    %146 = vmatpush.bf16.msra.mxu0 %v127
    %147 = vmatmul.bf16.gmra.mxu0 %v137
    %v148 = vpop.f32.mrf.mxu0
    %v149 = vadd.f32 0.0, %v148
    %v150 = vpop.f32.mrf.mxu0
    %v151 = vadd.f32 0.0, %v150
    %152 = vdwg.mxu0
    %153 = vmatpush.bf16.msra.mxu0 0
    %154 = vmatpush.bf16.msra.mxu0 0
    %155 = vmatpush.bf16.msra.mxu0 0
    %156 = vmatpush.bf16.msra.mxu0 0
    %157 = vmatpush.bf16.msra.mxu0 0
    %158 = vmatpush.bf16.msra.mxu0 0
    %159 = vmatpush.bf16.msra.mxu0 0
    %160 = vmatpush.bf16.msra.mxu0 %v128
    %161 = vmatmul.bf16.gmra.mxu0 %v137
    %v162 = vpop.f32.mrf.mxu0
    %v163 = vadd.f32 0.0, %v162
    %v164 = vpop.f32.mrf.mxu0
    %v165 = vadd.f32 0.0, %v164
    %166 = vdwg.mxu0
    %167 = vmatpush.bf16.msra.mxu0 0
    %168 = vmatpush.bf16.msra.mxu0 0
    %169 = vmatpush.bf16.msra.mxu0 0
    %170 = vmatpush.bf16.msra.mxu0 0
    %171 = vmatpush.bf16.msra.mxu0 0
    %172 = vmatpush.bf16.msra.mxu0 0
    %173 = vmatpush.bf16.msra.mxu0 0
    %174 = vmatpush.bf16.msra.mxu0 %v129
    %175 = vmatmul.bf16.gmra.mxu0 %v137
    %v176 = vpop.f32.mrf.mxu0
    %v177 = vadd.f32 0.0, %v176
    %v178 = vpop.f32.mrf.mxu0
    %v179 = vadd.f32 0.0, %v178
    %180 = vdwg.mxu0
    %181 = vmatpush.bf16.msra.mxu0 0
    %182 = vmatpush.bf16.msra.mxu0 0
    %183 = vmatpush.bf16.msra.mxu0 0
    %184 = vmatpush.bf16.msra.mxu0 0
    %185 = vmatpush.bf16.msra.mxu0 0
    %186 = vmatpush.bf16.msra.mxu0 0
    %187 = vmatpush.bf16.msra.mxu0 0
    %188 = vmatpush.bf16.msra.mxu0 %v130
    %189 = vmatmul.bf16.gmra.mxu0 %v137
    %v190 = vpop.f32.mrf.mxu0
    %v191 = vadd.f32 0.0, %v190
    %v192 = vpop.f32.mrf.mxu0
    %v193 = vadd.f32 0.0, %v192
    %194 = vdwg.mxu0
    %v195 = vrot.slane %v149, 7
    %v196 = vrot.slane %v151, 7
    %v197 = vlaneseq
    %v198 = vshrl.u32 %v197, 7
    %vm199 = vcmp.lt.s32.totalorder %v198, 1
    %v200 = vsel %vm199, %v195, %v196
    %v201 = vsel %vm199, %v196, %v195
    %v202 = vmul.f32 %v91, %v201
    %v203 = vmul.f32 %v96, %v200
    %v204 = vadd.f32 %v202, %v163
    %v205 = vadd.f32 %v203, %v165
    %v206 = vrot.slane %v177, 1
    %v207 = vrot.slane %v179, 1
    %vm208 = vcmp.lt.s32.totalorder %v198, 7
    %v209 = vsel %vm208, %v206, %v207
    %v210 = vsel %vm208, %v207, %v206
    %v211 = vmul.f32 %v100, %v209
    %v212 = vmul.f32 %v104, %v210
    %v213 = vadd.f32 %v204, %v211
    %v214 = vadd.f32 %v205, %v212
    %v215 = vperm.slane %v84, 0
    %v216 = vadd.f32 %v213, %v215
    %v217 = vadd.f32 %v214, %v215
    %v218 = vmul.f32 %v216, 0.01
    %v219 = vmul.f32 %v217, 0.01
    %v220 = vmax.f32 %v216, %v218
    %v221 = vmax.f32 %v217, %v219
    %v222 = vld [vmem:[#allocation7] sm:$0xff]
    %v223 = vld [vmem:[#allocation7 + $0x8] sm:$0xf]
    %v224 = vld [vmem:[#allocation7 + $0xc] sm:$0xff]
    %v225 = vld [vmem:[#allocation7 + $0x14] sm:$0xf]
    %v226 = vld [vmem:[#allocation7 + $0x18] sm:$0xff]
    %v227 = vld [vmem:[#allocation7 + $0x20] sm:$0xf]
    %v228 = vld [vmem:[#allocation7 + $0x24] sm:$0xff]
    %v229 = vld [vmem:[#allocation7 + $0x2c] sm:$0xf]
    %v230 = vld [vmem:[#allocation7 + $0x30] sm:$0xff]
    %v231 = vld [vmem:[#allocation7 + $0x38] sm:$0xf]
    %v232 = vld [vmem:[#allocation7 + $0x3c] sm:$0xff]
    %v233 = vld [vmem:[#allocation7 + $0x44] sm:$0xf]
    %v234 = vld [vmem:[#allocation7 + $0x48] sm:$0xff]
    %v235 = vld [vmem:[#allocation7 + $0x50] sm:$0xf]
    %v236 = vld [vmem:[#allocation7 + $0x54] sm:$0xff]
    %v237 = vld [vmem:[#allocation7 + $0x5c] sm:$0xf]
    %v238 = vld [vmem:[#allocation7 + $0x60] sm:$0xff]
    %v239 = vld [vmem:[#allocation7 + $0x68] sm:$0xf]
    %v240 = vld [vmem:[#allocation7 + $0x6c] sm:$0xff]
    %v241 = vld [vmem:[#allocation7 + $0x74] sm:$0xf]
    %v242 = vld [vmem:[#allocation7 + $0x78] sm:$0xff]
    %v243 = vld [vmem:[#allocation7 + $0x80] sm:$0xf]
    %v244 = vld [vmem:[#allocation7 + $0x84] sm:$0xff]
    %v245 = vld [vmem:[#allocation7 + $0x8c] sm:$0xf]
    %v246 = vld [vmem:[#allocation7 + $0x90] sm:$0xff]
    %v247 = vld [vmem:[#allocation7 + $0x98] sm:$0xf]
    %v248 = vld [vmem:[#allocation7 + $0x9c] sm:$0xff]
    %v249 = vld [vmem:[#allocation7 + $0xa4] sm:$0xf]
    %v250 = vld [vmem:[#allocation7 + $0xa8] sm:$0xff]
    %v251 = vld [vmem:[#allocation7 + $0xb0] sm:$0xf]
    %v252 = vld [vmem:[#allocation7 + $0xb4] sm:$0xff]
    %v253 = vld [vmem:[#allocation7 + $0xbc] sm:$0xf]
    %v254 = vpack.c.bf16 %v221, %v220
    %v287 = vunpack.c.l.b16 %v222
    %v288 = vunpack.c.h.b16 %v222
    %v289 = vunpack.c.l.b16 %v223
    %v290 = vunpack.c.l.b16 %v224
    %v291 = vunpack.c.h.b16 %v224
    %v292 = vunpack.c.l.b16 %v225
    %v293 = vunpack.c.l.b16 %v226
    %v294 = vunpack.c.h.b16 %v226
    %v295 = vunpack.c.l.b16 %v227
    %v296 = vunpack.c.l.b16 %v228
    %v297 = vunpack.c.h.b16 %v228
    %v298 = vunpack.c.l.b16 %v229
    %v299 = vunpack.c.l.b16 %v230
    %v300 = vunpack.c.h.b16 %v230
    %v301 = vunpack.c.l.b16 %v231
    %v302 = vunpack.c.l.b16 %v232
    %v303 = vunpack.c.h.b16 %v232
    %v304 = vunpack.c.l.b16 %v233
    %v305 = vunpack.c.l.b16 %v234
    %v306 = vunpack.c.h.b16 %v234
    %v307 = vunpack.c.l.b16 %v235
    %v308 = vunpack.c.l.b16 %v236
    %v309 = vunpack.c.h.b16 %v236
    %v310 = vunpack.c.l.b16 %v237
    %v311 = vunpack.c.l.b16 %v238
    %v312 = vunpack.c.h.b16 %v238
    %v313 = vunpack.c.l.b16 %v239
    %v314 = vunpack.c.l.b16 %v240
    %v315 = vunpack.c.h.b16 %v240
    %v316 = vunpack.c.l.b16 %v241
    %v317 = vunpack.c.l.b16 %v242
    %v318 = vunpack.c.h.b16 %v242
    %v319 = vunpack.c.l.b16 %v243
    %v320 = vunpack.c.l.b16 %v244
    %v321 = vunpack.c.h.b16 %v244
    %v322 = vunpack.c.l.b16 %v245
    %v323 = vunpack.c.l.b16 %v246
    %v324 = vunpack.c.h.b16 %v246
    %v325 = vunpack.c.l.b16 %v247
    %v326 = vunpack.c.l.b16 %v248
    %v327 = vunpack.c.h.b16 %v248
    %v328 = vunpack.c.l.b16 %v249
    %v329 = vunpack.c.l.b16 %v250
    %v330 = vunpack.c.h.b16 %v250
    %v331 = vunpack.c.l.b16 %v251
    %v332 = vunpack.c.l.b16 %v252
    %v333 = vunpack.c.h.b16 %v252
    %v334 = vunpack.c.l.b16 %v253
    %v335 = vpack.c.b16 %v290, %v287
    %v336 = vpack.c.b16 %v291, %v288
    %v337 = vpack.c.b16 %v292, %v289
    %v338 = vpack.c.b16 %v296, %v293
    %v339 = vpack.c.b16 %v297, %v294
    %v340 = vpack.c.b16 %v298, %v295
    %v341 = vpack.c.b16 %v302, %v299
    %v342 = vpack.c.b16 %v303, %v300
    %v343 = vpack.c.b16 %v304, %v301
    %v344 = vpack.c.b16 %v308, %v305
    %v345 = vpack.c.b16 %v309, %v306
    %v346 = vpack.c.b16 %v310, %v307
    %v347 = vpack.c.b16 %v314, %v311
    %v348 = vpack.c.b16 %v315, %v312
    %v349 = vpack.c.b16 %v316, %v313
    %v350 = vpack.c.b16 %v320, %v317
    %v351 = vpack.c.b16 %v321, %v318
    %v352 = vpack.c.b16 %v322, %v319
    %v353 = vpack.c.b16 %v326, %v323
    %v354 = vpack.c.b16 %v327, %v324
    %v355 = vpack.c.b16 %v328, %v325
    %v356 = vpack.c.b16 %v332, %v329
    %v357 = vpack.c.b16 %v333, %v330
    %v358 = vpack.c.b16 %v334, %v331
    %383 = vmatpush.bf16.msra.mxu0 %v356
    %384 = vmatpush.bf16.msra.mxu0 %v353
    %385 = vmatpush.bf16.msra.mxu0 %v350
    %386 = vmatpush.bf16.msra.mxu0 %v347
    %387 = vmatpush.bf16.msra.mxu0 %v344
    %388 = vmatpush.bf16.msra.mxu0 %v341
    %389 = vmatpush.bf16.msra.mxu0 %v338
    %390 = vmatpush.bf16.msra.mxu0 %v335
    %391 = vmatmul.bf16.gmra.mxu0 %v254
    %v392 = vpop.f32.mrf.mxu0
    %v393 = vadd.f32 0.0, %v392
    %v394 = vpop.f32.mrf.mxu0
    %v395 = vadd.f32 0.0, %v394
    %396 = vdwg.mxu0
    %397 = vmatpush.bf16.msra.mxu0 %v357
    %398 = vmatpush.bf16.msra.mxu0 %v354
    %399 = vmatpush.bf16.msra.mxu0 %v351
    %400 = vmatpush.bf16.msra.mxu0 %v348
    %401 = vmatpush.bf16.msra.mxu0 %v345
    %402 = vmatpush.bf16.msra.mxu0 %v342
    %403 = vmatpush.bf16.msra.mxu0 %v339
    %404 = vmatpush.bf16.msra.mxu0 %v336
    %405 = vmatmul.bf16.gmra.mxu0 %v254
    %v406 = vpop.f32.mrf.mxu0
    %v407 = vadd.f32 0.0, %v406
    %v408 = vpop.f32.mrf.mxu0
    %v409 = vadd.f32 0.0, %v408
    %410 = vdwg.mxu0
    %411 = vmatpush.bf16.msra.mxu0 %v358
    %412 = vmatpush.bf16.msra.mxu0 %v355
    %413 = vmatpush.bf16.msra.mxu0 %v352
    %414 = vmatpush.bf16.msra.mxu0 %v349
    %415 = vmatpush.bf16.msra.mxu0 %v346
    %416 = vmatpush.bf16.msra.mxu0 %v343
    %417 = vmatpush.bf16.msra.mxu0 %v340
    %418 = vmatpush.bf16.msra.mxu0 %v337
    %419 = vmatmul.bf16.gmra.mxu0 %v254
    %v420 = vpop.f32.mrf.mxu0
    %v421 = vadd.f32 0.0, %v420
    %v422 = vpop.f32.mrf.mxu0
    %v423 = vadd.f32 0.0, %v422
    %424 = vdwg.mxu0
    %v425 = vrot.slane %v393, 7
    %v426 = vrot.slane %v395, 7
    %v427 = vsel %vm199, %v425, %v426
    %v428 = vsel %vm199, %v426, %v425
    %v429 = vmul.f32 %v91, %v428
    %v430 = vmul.f32 %v96, %v427
    %v431 = vadd.f32 %v429, %v407
    %v432 = vadd.f32 %v430, %v409
    %v433 = vrot.slane %v421, 1
    %v434 = vrot.slane %v423, 1
    %v435 = vsel %vm208, %v433, %v434
    %v436 = vsel %vm208, %v434, %v433
    %v437 = vmul.f32 %v100, %v435
    %v438 = vmul.f32 %v104, %v436
    %v439 = vadd.f32 %v431, %v437
    %v440 = vadd.f32 %v432, %v438
    %v441 = vperm.slane %v84, 1
    %v442 = vadd.f32 %v439, %v441
    %v443 = vadd.f32 %v440, %v441
    %v444 = vmul.f32 %v442, 0.01
    %v445 = vmul.f32 %v443, 0.01
    %v446 = vmax.f32 %v442, %v444
    %v447 = vmax.f32 %v443, %v445
    %v448 = vld [vmem:[#allocation7 + $0xc0] sm:$0xff]
    %v449 = vld [vmem:[#allocation7 + $0xc8] sm:$0xf]
    %v450 = vld [vmem:[#allocation7 + $0xcc] sm:$0xff]
    %v451 = vld [vmem:[#allocation7 + $0xd4] sm:$0xf]
    %v452 = vld [vmem:[#allocation7 + $0xd8] sm:$0xff]
    %v453 = vld [vmem:[#allocation7 + $0xe0] sm:$0xf]
    %v454 = vld [vmem:[#allocation7 + $0xe4] sm:$0xff]
    %v455 = vld [vmem:[#allocation7 + $0xec] sm:$0xf]
    %v456 = vld [vmem:[#allocation7 + $0xf0] sm:$0xff]
    %v457 = vld [vmem:[#allocation7 + $0xf8] sm:$0xf]
    %v458 = vld [vmem:[#allocation7 + $0xfc] sm:$0xff]
    %v459 = vld [vmem:[#allocation7 + $0x104] sm:$0xf]
    %v460 = vld [vmem:[#allocation7 + $0x108] sm:$0xff]
    %v461 = vld [vmem:[#allocation7 + $0x110] sm:$0xf]
    %v462 = vld [vmem:[#allocation7 + $0x114] sm:$0xff]
    %v463 = vld [vmem:[#allocation7 + $0x11c] sm:$0xf]
    %v464 = vld [vmem:[#allocation7 + $0x120] sm:$0xff]
    %v465 = vld [vmem:[#allocation7 + $0x128] sm:$0xf]
    %v466 = vld [vmem:[#allocation7 + $0x12c] sm:$0xff]
    %v467 = vld [vmem:[#allocation7 + $0x134] sm:$0xf]
    %v468 = vld [vmem:[#allocation7 + $0x138] sm:$0xff]
    %v469 = vld [vmem:[#allocation7 + $0x140] sm:$0xf]
    %v470 = vld [vmem:[#allocation7 + $0x144] sm:$0xff]
    %v471 = vld [vmem:[#allocation7 + $0x14c] sm:$0xf]
    %v472 = vld [vmem:[#allocation7 + $0x150] sm:$0xff]
    %v473 = vld [vmem:[#allocation7 + $0x158] sm:$0xf]
    %v474 = vld [vmem:[#allocation7 + $0x15c] sm:$0xff]
    %v475 = vld [vmem:[#allocation7 + $0x164] sm:$0xf]
    %v476 = vld [vmem:[#allocation7 + $0x168] sm:$0xff]
    %v477 = vld [vmem:[#allocation7 + $0x170] sm:$0xf]
    %v478 = vld [vmem:[#allocation7 + $0x174] sm:$0xff]
    %v479 = vld [vmem:[#allocation7 + $0x17c] sm:$0xf]
    %v480 = vpack.c.bf16 %v447, %v446
    %v513 = vunpack.c.l.b16 %v448
    %v514 = vunpack.c.h.b16 %v448
    %v515 = vunpack.c.l.b16 %v449
    %v516 = vunpack.c.l.b16 %v450
    %v517 = vunpack.c.h.b16 %v450
    %v518 = vunpack.c.l.b16 %v451
    %v519 = vunpack.c.l.b16 %v452
    %v520 = vunpack.c.h.b16 %v452
    %v521 = vunpack.c.l.b16 %v453
    %v522 = vunpack.c.l.b16 %v454
    %v523 = vunpack.c.h.b16 %v454
    %v524 = vunpack.c.l.b16 %v455
    %v525 = vunpack.c.l.b16 %v456
    %v526 = vunpack.c.h.b16 %v456
    %v527 = vunpack.c.l.b16 %v457
    %v528 = vunpack.c.l.b16 %v458
    %v529 = vunpack.c.h.b16 %v458
    %v530 = vunpack.c.l.b16 %v459
    %v531 = vunpack.c.l.b16 %v460
    %v532 = vunpack.c.h.b16 %v460
    %v533 = vunpack.c.l.b16 %v461
    %v534 = vunpack.c.l.b16 %v462
    %v535 = vunpack.c.h.b16 %v462
    %v536 = vunpack.c.l.b16 %v463
    %v537 = vunpack.c.l.b16 %v464
    %v538 = vunpack.c.h.b16 %v464
    %v539 = vunpack.c.l.b16 %v465
    %v540 = vunpack.c.l.b16 %v466
    %v541 = vunpack.c.h.b16 %v466
    %v542 = vunpack.c.l.b16 %v467
    %v543 = vunpack.c.l.b16 %v468
    %v544 = vunpack.c.h.b16 %v468
    %v545 = vunpack.c.l.b16 %v469
    %v546 = vunpack.c.l.b16 %v470
    %v547 = vunpack.c.h.b16 %v470
    %v548 = vunpack.c.l.b16 %v471
    %v549 = vunpack.c.l.b16 %v472
    %v550 = vunpack.c.h.b16 %v472
    %v551 = vunpack.c.l.b16 %v473
    %v552 = vunpack.c.l.b16 %v474
    %v553 = vunpack.c.h.b16 %v474
    %v554 = vunpack.c.l.b16 %v475
    %v555 = vunpack.c.l.b16 %v476
    %v556 = vunpack.c.h.b16 %v476
    %v557 = vunpack.c.l.b16 %v477
    %v558 = vunpack.c.l.b16 %v478
    %v559 = vunpack.c.h.b16 %v478
    %v560 = vunpack.c.l.b16 %v479
    %v561 = vpack.c.b16 %v516, %v513
    %v562 = vpack.c.b16 %v517, %v514
    %v563 = vpack.c.b16 %v518, %v515
    %v564 = vpack.c.b16 %v522, %v519
    %v565 = vpack.c.b16 %v523, %v520
    %v566 = vpack.c.b16 %v524, %v521
    %v567 = vpack.c.b16 %v528, %v525
    %v568 = vpack.c.b16 %v529, %v526
    %v569 = vpack.c.b16 %v530, %v527
    %v570 = vpack.c.b16 %v534, %v531
    %v571 = vpack.c.b16 %v535, %v532
    %v572 = vpack.c.b16 %v536, %v533
    %v573 = vpack.c.b16 %v540, %v537
    %v574 = vpack.c.b16 %v541, %v538
    %v575 = vpack.c.b16 %v542, %v539
    %v576 = vpack.c.b16 %v546, %v543
    %v577 = vpack.c.b16 %v547, %v544
    %v578 = vpack.c.b16 %v548, %v545
    %v579 = vpack.c.b16 %v552, %v549
    %v580 = vpack.c.b16 %v553, %v550
    %v581 = vpack.c.b16 %v554, %v551
    %v582 = vpack.c.b16 %v558, %v555
    %v583 = vpack.c.b16 %v559, %v556
    %v584 = vpack.c.b16 %v560, %v557
    %609 = vmatpush.bf16.msra.mxu0 %v582
    %610 = vmatpush.bf16.msra.mxu0 %v579
    %611 = vmatpush.bf16.msra.mxu0 %v576
    %612 = vmatpush.bf16.msra.mxu0 %v573
    %613 = vmatpush.bf16.msra.mxu0 %v570
    %614 = vmatpush.bf16.msra.mxu0 %v567
    %615 = vmatpush.bf16.msra.mxu0 %v564
    %616 = vmatpush.bf16.msra.mxu0 %v561
    %617 = vmatmul.bf16.gmra.mxu0 %v480
    %v618 = vpop.f32.mrf.mxu0
    %v619 = vadd.f32 0.0, %v618
    %v620 = vpop.f32.mrf.mxu0
    %v621 = vadd.f32 0.0, %v620
    %622 = vdwg.mxu0
    %623 = vmatpush.bf16.msra.mxu0 %v583
    %624 = vmatpush.bf16.msra.mxu0 %v580
    %625 = vmatpush.bf16.msra.mxu0 %v577
    %626 = vmatpush.bf16.msra.mxu0 %v574
    %627 = vmatpush.bf16.msra.mxu0 %v571
    %628 = vmatpush.bf16.msra.mxu0 %v568
    %629 = vmatpush.bf16.msra.mxu0 %v565
    %630 = vmatpush.bf16.msra.mxu0 %v562
    %631 = vmatmul.bf16.gmra.mxu0 %v480
    %v632 = vpop.f32.mrf.mxu0
    %v633 = vadd.f32 0.0, %v632
    %v634 = vpop.f32.mrf.mxu0
    %v635 = vadd.f32 0.0, %v634
    %636 = vdwg.mxu0
    %637 = vmatpush.bf16.msra.mxu0 %v584
    %638 = vmatpush.bf16.msra.mxu0 %v581
    %639 = vmatpush.bf16.msra.mxu0 %v578
    %640 = vmatpush.bf16.msra.mxu0 %v575
    %641 = vmatpush.bf16.msra.mxu0 %v572
    %642 = vmatpush.bf16.msra.mxu0 %v569
    %643 = vmatpush.bf16.msra.mxu0 %v566
    %644 = vmatpush.bf16.msra.mxu0 %v563
    %645 = vmatmul.bf16.gmra.mxu0 %v480
    %v646 = vpop.f32.mrf.mxu0
    %v647 = vadd.f32 0.0, %v646
    %v648 = vpop.f32.mrf.mxu0
    %v649 = vadd.f32 0.0, %v648
    %650 = vdwg.mxu0
    %v651 = vrot.slane %v619, 7
    %v652 = vrot.slane %v621, 7
    %v653 = vsel %vm199, %v651, %v652
    %v654 = vsel %vm199, %v652, %v651
    %v655 = vmul.f32 %v91, %v654
    %v656 = vmul.f32 %v96, %v653
    %v657 = vadd.f32 %v655, %v633
    %v658 = vadd.f32 %v656, %v635
    %v659 = vrot.slane %v647, 1
    %v660 = vrot.slane %v649, 1
    %v661 = vsel %vm208, %v659, %v660
    %v662 = vsel %vm208, %v660, %v659
    %v663 = vmul.f32 %v100, %v661
    %v664 = vmul.f32 %v104, %v662
    %v665 = vadd.f32 %v657, %v663
    %v666 = vadd.f32 %v658, %v664
    %v667 = vperm.slane %v84, 2
    %v668 = vadd.f32 %v665, %v667
    %v669 = vadd.f32 %v666, %v667
    %v670 = vmul.f32 %v668, 0.01
    %v671 = vmul.f32 %v669, 0.01
    %v672 = vmax.f32 %v668, %v670
    %v673 = vmax.f32 %v669, %v671
    %v674 = vadd.f32 %v672, %v191
    %v675 = vadd.f32 %v673, %v193
    %v676 = vrot.slane %v674, 7
    %v677 = vrot.slane %v675, 7
    %v678 = vsel %vm199, %v676, %v677
    %v679 = vsel %vm199, %v677, %v676
    %v680 = vmul.f32 %v91, %v679
    %v681 = vmul.f32 %v96, %v678
    %v682 = vperm.slane %v84, 3
    %v683 = vmul.f32 %v680, %v682
    %v684 = vmul.f32 %v681, %v682
    %v685 = vperm.slane %v84, 4
    %v686 = vmul.f32 %v674, %v685
    %v687 = vmul.f32 %v675, %v685
    %v688 = vadd.f32 %v683, %v686
    %v689 = vadd.f32 %v684, %v687
    %v690 = vrot.slane %v674, 1
    %v691 = vrot.slane %v675, 1
    %v692 = vsel %vm208, %v690, %v691
    %v693 = vsel %vm208, %v691, %v690
    %v694 = vmul.f32 %v100, %v692
    %v695 = vmul.f32 %v104, %v693
    %v696 = vperm.slane %v84, 5
    %v697 = vmul.f32 %v694, %v696
    %v698 = vmul.f32 %v695, %v696
    %v699 = vadd.f32 %v688, %v697
    %v700 = vadd.f32 %v689, %v698
    %v701 = vld [vmem:[#allocation7 + $0x180] sm:$0xf]
    %v702 = vld [vmem:[#allocation7 + $0x18c] sm:$0xf]
    %v703 = vld [vmem:[#allocation7 + $0x198] sm:$0xf]
    %v704 = vld [vmem:[#allocation7 + $0x1a4] sm:$0xf]
    %v705 = vld [vmem:[#allocation7 + $0x1b0] sm:$0xf]
    %v706 = vld [vmem:[#allocation7 + $0x1bc] sm:$0xf]
    %v707 = vld [vmem:[#allocation7 + $0x1c8] sm:$0xf]
    %v708 = vld [vmem:[#allocation7 + $0x1d4] sm:$0xf]
    %v709 = vld [vmem:[#allocation7 + $0x1e0] sm:$0xf]
    %v710 = vld [vmem:[#allocation7 + $0x1ec] sm:$0xf]
    %v711 = vld [vmem:[#allocation7 + $0x1f8] sm:$0xf]
    %v712 = vld [vmem:[#allocation7 + $0x204] sm:$0xf]
    %v713 = vld [vmem:[#allocation7 + $0x210] sm:$0xf]
    %v714 = vld [vmem:[#allocation7 + $0x21c] sm:$0xf]
    %v715 = vld [vmem:[#allocation7 + $0x228] sm:$0xf]
    %v716 = vld [vmem:[#allocation7 + $0x234] sm:$0xf]
    %v717 = vpack.c.bf16 %v700, %v699
    %v718 = vperm.slane %v84, 6
    %v735 = vunpack.c.l.b16 %v701
    %v736 = vunpack.c.l.b16 %v702
    %v737 = vunpack.c.l.b16 %v703
    %v738 = vunpack.c.l.b16 %v704
    %v739 = vunpack.c.l.b16 %v705
    %v740 = vunpack.c.l.b16 %v706
    %v741 = vunpack.c.l.b16 %v707
    %v742 = vunpack.c.l.b16 %v708
    %v743 = vunpack.c.l.b16 %v709
    %v744 = vunpack.c.l.b16 %v710
    %v745 = vunpack.c.l.b16 %v711
    %v746 = vunpack.c.l.b16 %v712
    %v747 = vunpack.c.l.b16 %v713
    %v748 = vunpack.c.l.b16 %v714
    %v749 = vunpack.c.l.b16 %v715
    %v750 = vunpack.c.l.b16 %v716
    %v751 = vpack.c.b16 %v736, %v735
    %v752 = vpack.c.b16 %v738, %v737
    %v753 = vpack.c.b16 %v740, %v739
    %v754 = vpack.c.b16 %v742, %v741
    %v755 = vpack.c.b16 %v744, %v743
    %v756 = vpack.c.b16 %v746, %v745
    %v757 = vpack.c.b16 %v748, %v747
    %v758 = vpack.c.b16 %v750, %v749
    %767 = vmatpush.bf16.msra.mxu0 %v758
    %768 = vmatpush.bf16.msra.mxu0 %v757
    %769 = vmatpush.bf16.msra.mxu0 %v756
    %770 = vmatpush.bf16.msra.mxu0 %v755
    %771 = vmatpush.bf16.msra.mxu0 %v754
    %772 = vmatpush.bf16.msra.mxu0 %v753
    %773 = vmatpush.bf16.msra.mxu0 %v752
    %774 = vmatpush.bf16.msra.mxu0 %v751
    %775 = vmatmul.bf16.gmra.mxu0 %v717
    %v776 = vpop.f32.mrf.mxu0
    %v777 = vadd.f32 %v718, %v776
    %v778 = vpop.f32.mrf.mxu0
    %v779 = vadd.f32 %v718, %v778
    %780 = vdwg.mxu0
    %v781 = vmul.f32 %v777, 0.01
    %v782 = vmul.f32 %v779, 0.01
    %v783 = vmax.f32 %v777, %v781
    %v784 = vmax.f32 %v779, %v782
    %v785 = vld [vmem:[#allocation7 + $0x184] sm:$0xf]
    %v786 = vld [vmem:[#allocation7 + $0x190] sm:$0xf]
    %v787 = vld [vmem:[#allocation7 + $0x19c] sm:$0xf]
    %v788 = vld [vmem:[#allocation7 + $0x1a8] sm:$0xf]
    %v789 = vld [vmem:[#allocation7 + $0x1b4] sm:$0xf]
    %v790 = vld [vmem:[#allocation7 + $0x1c0] sm:$0xf]
    %v791 = vld [vmem:[#allocation7 + $0x1cc] sm:$0xf]
    %v792 = vld [vmem:[#allocation7 + $0x1d8] sm:$0xf]
    %v793 = vld [vmem:[#allocation7 + $0x1e4] sm:$0xf]
    %v794 = vld [vmem:[#allocation7 + $0x1f0] sm:$0xf]
    %v795 = vld [vmem:[#allocation7 + $0x1fc] sm:$0xf]
    %v796 = vld [vmem:[#allocation7 + $0x208] sm:$0xf]
    %v797 = vld [vmem:[#allocation7 + $0x214] sm:$0xf]
    %v798 = vld [vmem:[#allocation7 + $0x220] sm:$0xf]
    %v799 = vld [vmem:[#allocation7 + $0x22c] sm:$0xf]
    %v800 = vld [vmem:[#allocation7 + $0x238] sm:$0xf]
    %v801 = vpack.c.bf16 %v784, %v783
    %v802 = vperm.slane %v84, 7
    %v819 = vunpack.c.l.b16 %v785
    %v820 = vunpack.c.l.b16 %v786
    %v821 = vunpack.c.l.b16 %v787
    %v822 = vunpack.c.l.b16 %v788
    %v823 = vunpack.c.l.b16 %v789
    %v824 = vunpack.c.l.b16 %v790
    %v825 = vunpack.c.l.b16 %v791
    %v826 = vunpack.c.l.b16 %v792
    %v827 = vunpack.c.l.b16 %v793
    %v828 = vunpack.c.l.b16 %v794
    %v829 = vunpack.c.l.b16 %v795
    %v830 = vunpack.c.l.b16 %v796
    %v831 = vunpack.c.l.b16 %v797
    %v832 = vunpack.c.l.b16 %v798
    %v833 = vunpack.c.l.b16 %v799
    %v834 = vunpack.c.l.b16 %v800
    %v835 = vpack.c.b16 %v820, %v819
    %v836 = vpack.c.b16 %v822, %v821
    %v837 = vpack.c.b16 %v824, %v823
    %v838 = vpack.c.b16 %v826, %v825
    %v839 = vpack.c.b16 %v828, %v827
    %v840 = vpack.c.b16 %v830, %v829
    %v841 = vpack.c.b16 %v832, %v831
    %v842 = vpack.c.b16 %v834, %v833
    %851 = vmatpush.bf16.msra.mxu0 %v842
    %852 = vmatpush.bf16.msra.mxu0 %v841
    %853 = vmatpush.bf16.msra.mxu0 %v840
    %854 = vmatpush.bf16.msra.mxu0 %v839
    %855 = vmatpush.bf16.msra.mxu0 %v838
    %856 = vmatpush.bf16.msra.mxu0 %v837
    %857 = vmatpush.bf16.msra.mxu0 %v836
    %858 = vmatpush.bf16.msra.mxu0 %v835
    %859 = vmatmul.bf16.gmra.mxu0 %v801
    %v860 = vpop.f32.mrf.mxu0
    %v861 = vadd.f32 %v802, %v860
    %v862 = vpop.f32.mrf.mxu0
    %v863 = vadd.f32 %v802, %v862
    %864 = vdwg.mxu0
    %v865 = vmul.f32 %v861, 0.01
    %v866 = vmul.f32 %v863, 0.01
    %v867 = vmax.f32 %v861, %v865
    %v868 = vmax.f32 %v863, %v866
    %v869 = vld [vmem:[#allocation7 + $0x188] sm:$0xf]
    %v870 = vld [vmem:[#allocation7 + $0x194] sm:$0xf]
    %v871 = vld [vmem:[#allocation7 + $0x1a0] sm:$0xf]
    %v872 = vld [vmem:[#allocation7 + $0x1ac] sm:$0xf]
    %v873 = vld [vmem:[#allocation7 + $0x1b8] sm:$0xf]
    %v874 = vld [vmem:[#allocation7 + $0x1c4] sm:$0xf]
    %v875 = vld [vmem:[#allocation7 + $0x1d0] sm:$0xf]
    %v876 = vld [vmem:[#allocation7 + $0x1dc] sm:$0xf]
    %v877 = vld [vmem:[#allocation7 + $0x1e8] sm:$0xf]
    %v878 = vld [vmem:[#allocation7 + $0x1f4] sm:$0xf]
    %v879 = vld [vmem:[#allocation7 + $0x200] sm:$0xf]
    %v880 = vld [vmem:[#allocation7 + $0x20c] sm:$0xf]
    %v881 = vld [vmem:[#allocation7 + $0x218] sm:$0xf]
    %v882 = vld [vmem:[#allocation7 + $0x224] sm:$0xf]
    %v883 = vld [vmem:[#allocation7 + $0x230] sm:$0xf]
    %v884 = vld [vmem:[#allocation7 + $0x23c] sm:$0xf]
    %v885 = vpack.c.bf16 %v868, %v867
    %v886 = vperm.slane %v85, 0
    %v903 = vunpack.c.l.b16 %v869
    %v904 = vunpack.c.l.b16 %v870
    %v905 = vunpack.c.l.b16 %v871
    %v906 = vunpack.c.l.b16 %v872
    %v907 = vunpack.c.l.b16 %v873
    %v908 = vunpack.c.l.b16 %v874
    %v909 = vunpack.c.l.b16 %v875
    %v910 = vunpack.c.l.b16 %v876
    %v911 = vunpack.c.l.b16 %v877
    %v912 = vunpack.c.l.b16 %v878
    %v913 = vunpack.c.l.b16 %v879
    %v914 = vunpack.c.l.b16 %v880
    %v915 = vunpack.c.l.b16 %v881
    %v916 = vunpack.c.l.b16 %v882
    %v917 = vunpack.c.l.b16 %v883
    %v918 = vunpack.c.l.b16 %v884
    %v919 = vpack.c.b16 %v904, %v903
    %v920 = vpack.c.b16 %v906, %v905
    %v921 = vpack.c.b16 %v908, %v907
    %v922 = vpack.c.b16 %v910, %v909
    %v923 = vpack.c.b16 %v912, %v911
    %v924 = vpack.c.b16 %v914, %v913
    %v925 = vpack.c.b16 %v916, %v915
    %v926 = vpack.c.b16 %v918, %v917
    %935 = vmatpush.bf16.msra.mxu0 %v926
    %936 = vmatpush.bf16.msra.mxu0 %v925
    %937 = vmatpush.bf16.msra.mxu0 %v924
    %938 = vmatpush.bf16.msra.mxu0 %v923
    %939 = vmatpush.bf16.msra.mxu0 %v922
    %940 = vmatpush.bf16.msra.mxu0 %v921
    %941 = vmatpush.bf16.msra.mxu0 %v920
    %942 = vmatpush.bf16.msra.mxu0 %v919
    %943 = vmatmul.bf16.gmra.mxu0 %v885
    %v944 = vpop.f32.mrf.mxu0
    %v945 = vadd.f32 %v886, %v944
    %v946 = vpop.f32.mrf.mxu0
    %v947 = vadd.f32 %v886, %v946
    %948 = vdwg.mxu0
    %949 = vst [vmem:[#allocation10] sm:$0xff] %v945
    %950 = vst [vmem:[#allocation10 + $0x8] sm:$0xff] %v947
    // Predicated region
    $region34: #{tpu_custom_call.1} parent=1 // pred_check
      _
    $region35: #{tpu_custom_call.1} parent=1 // pred_check_branch
      %952 = sbr.rel (0) target = $region37
    $region36: #{tpu_custom_call.1} parent=1 // pred_region
      %954 = vsyncadd [#allocation4], 0
      %s955 = sshll.u32 [#allocation10], 4
      %s956 = int_to_ptr.vmem [resolvable:$true] %s955
      %s957 = sshll.u32 %s4, 4
      %s958 = int_to_ptr.hbm [resolvable:$true] %s957
      %963 = dma.vmem_to_hbm [thread:$0]  %s956, 256, %s958, [#allocation4], 128, 128, 8
    $region37: #{tpu_custom_call.1} parent=1 // pred_fallthru
      _
    // Predicated region
    $region38: #{tpu_custom_call.1} parent=1 // pred_check
      _
    $region39: #{tpu_custom_call.1} parent=1 // pred_check_branch
      %965 = sbr.rel (0) target = $region41
    $region40: #{tpu_custom_call.1} parent=1 // pred_region
      %967 = dma.done [#allocation4], 256
    $region41: #{tpu_custom_call.1} parent=1 // pred_fallthru
      _
    %968 = vsyncpa [#allocation3], 1
    %969 = vsyncpa [#allocation6], 1
    %970 = vsyncpa [#allocation9], 1
    %971 = vsyncpa [#allocation4], 1

</llo_original>
